<compile_context>
chip_gen: v7x
topology: tpu7x:2x2x1
jax: 0.10.0
libtpu: 0.0.40
codegen_flags: <defaults>
</compile_context>

<pallas_src>
import functools

import jax
import jax.numpy as jnp
from jax.experimental import pallas as pl
from jax.experimental.pallas import tpu as pltpu

_LANE = 128
_MIB = 1024 * 1024


def _round_up(x: int, m: int) -> int:
    return ((x + m - 1) // m) * m


def _sublane_multiple(dtype) -> int:
    # (8,128) f32 vreg tiles; packed dtypes need 16 (bf16) / 32 (int8/fp8) rows.
    return {4: 8, 2: 16, 1: 32}.get(jnp.dtype(dtype).itemsize, 8)


def _glu_kernel(x_ref, w12_ref, w3_ref, o_ref, *, d2p):
    x = x_ref[...]
    # Fused l1/l2 projection: one wide matmul, fp32 accumulation on the MXU.
    o12 = jnp.dot(x, w12_ref[...], preferred_element_type=jnp.float32)
    # Elementwise gate in fp32 (VPU), downcast once before the second matmul.
    h = (o12[:, :d2p] * o12[:, d2p:]).astype(x.dtype)
    # l3 projection back to d1 (MXU, fp32 accumulation).
    out = jnp.dot(h, w3_ref[...], preferred_element_type=jnp.float32)
    o_ref[...] = out.astype(o_ref.dtype)


@functools.partial(jax.jit, static_argnames=("block_m", "single_buffer_weights"))
def _glu_forward_impl(x, w1, w2, w3, *, block_m, single_buffer_weights):
    batch, seq, d1 = x.shape
    d2 = w1.shape[0]
    M = batch * seq
    dtype = x.dtype
    itemsize = jnp.dtype(dtype).itemsize
    sub = _sublane_multiple(dtype)

    # Lane-dense padded feature dims (multiples of 128).
    d1p = _round_up(d1, _LANE)
    d2p = _round_up(d2, _LANE)

    # Token tile: as large as block_m allows (rounded to the sublane multiple),
    # but no larger than (padded) M, and within a conservative VMEM budget
    # (v7x only has 64 MiB of VMEM per TensorCore).
    tm = min(_round_up(block_m, sub), _round_up(M, sub))
    weight_bufs = 1 if single_buffer_weights else 2
    weight_bytes = (2 * d1p * d2p + d2p * d1p) * itemsize * weight_bufs

    def _vmem_needed(tm_):
        io = 2 * 2 * tm_ * d1p * itemsize      # x / out tiles, double buffered
        interm = tm_ * (3 * d2p + d1p) * 4     # fp32 o12 / gate / out values
        return weight_bytes + io + interm

    budget = 56 * _MIB
    while tm > sub and _vmem_needed(tm) > budget:
        tm = max(sub, _round_up(tm // 2, sub))
    # TODO(synk): if weight_bytes alone exceeds the budget (very large d1/d2 on
    # v7x), tile d2 with a second "arbitrary" grid axis and a fp32 VMEM
    # accumulator for the l3 matmul instead of fully-resident weights.

    m_pad = _round_up(M, tm)

    # Glue (plain JAX): flatten tokens, pad features, fuse + transpose weights
    # to (in, out) layout. Zero-width pads are no-ops; pads only materialize
    # when the shapes actually need them.
    x2d = x.reshape(M, d1)
    if m_pad != M or d1p != d1:
        x2d = jnp.pad(x2d, ((0, m_pad - M), (0, d1p - d1)))
    w1t = jnp.pad(w1.T, ((0, d1p - d1), (0, d2p - d2))).astype(dtype)
    w2t = jnp.pad(w2.T, ((0, d1p - d1), (0, d2p - d2))).astype(dtype)
    w12t = jnp.concatenate([w1t, w2t], axis=1)                         # (d1p, 2*d2p)
    w3t = jnp.pad(w3.T, ((0, d2p - d2), (0, d1p - d1))).astype(dtype)  # (d2p, d1p)

    grid = (m_pad // tm,)

    weight_spec_kwargs = {}
    if single_buffer_weights:
        weight_spec_kwargs["pipeline_mode"] = pl.Buffered(1)

    cost = pl.CostEstimate(
        flops=6 * m_pad * d1p * d2p + m_pad * d2p,
        transcendentals=0,
        bytes_accessed=(2 * m_pad * d1p + 3 * d1p * d2p) * itemsize,
    )
    vmem_limit = int(min(max(_vmem_needed(tm) * 5 // 4, 32 * _MIB), 96 * _MIB))

    out = pl.pallas_call(
        functools.partial(_glu_kernel, d2p=d2p),
        out_shape=jax.ShapeDtypeStruct((m_pad, d1p), dtype),
        grid_spec=pltpu.PrefetchScalarGridSpec(
            num_scalar_prefetch=0,
            grid=grid,
            in_specs=[
                pl.BlockSpec((tm, d1p), lambda i: (i, 0)),           # x tile
                pl.BlockSpec((d1p, 2 * d2p), lambda i: (0, 0),       # fused W1|W2
                             **weight_spec_kwargs),
                pl.BlockSpec((d2p, d1p), lambda i: (0, 0),           # W3
                             **weight_spec_kwargs),
            ],
            out_specs=pl.BlockSpec((tm, d1p), lambda i: (i, 0)),
        ),
        compiler_params=pltpu.CompilerParams(
            dimension_semantics=("parallel",),
            vmem_limit_bytes=vmem_limit,
        ),
        cost_estimate=cost,
    )(x2d, w12t, w3t)

    if m_pad != M or d1p != d1:
        out = out[:M, :d1]
    return out.reshape(batch, seq, d1)


def glu_forward(x, w1, w2, w3, *, block_m=512):
    """x: (batch, seq, d1); w1/w2: (d2, d1); w3: (d1, d2) (PyTorch layouts)."""
    try:
        out = _glu_forward_impl(
            x, w1, w2, w3, block_m=block_m, single_buffer_weights=True)
        jax.block_until_ready(out)  # surface any compile/runtime failure here
        return out
    except Exception:
        # pl.Buffered(1) on the resident weights not supported by this
        # jax/libtpu combination -- fall back to default double buffering.
        return _glu_forward_impl(
            x, w1, w2, w3, block_m=block_m, single_buffer_weights=False)


def glu_reference(x, w1, w2, w3):
    o1 = jnp.einsum("bsd,ed->bse", x, w1)
    o2 = jnp.einsum("bsd,ed->bse", x, w2)
    return jnp.einsum("bse,de->bsd", o1 * o2, w3)


if __name__ == "__main__":
    # Small shapes consistent with the module's forward: (batch, seq, d1).
    batch, seq, d1, d2 = 2, 8, 32, 64

    key = jax.random.PRNGKey(0)
    kx, k1, k2, k3 = jax.random.split(key, 4)

    x = jax.random.normal(kx, (batch, seq, d1), dtype=jnp.float32)
    # Deterministic "Linear" weights (PyTorch layout: (out_features, in_features)).
    w1 = jax.random.normal(k1, (d2, d1), dtype=jnp.float32) * (1.0 / d1) ** 0.5
    w2 = jax.random.normal(k2, (d2, d1), dtype=jnp.float32) * (1.0 / d1) ** 0.5
    w3 = jax.random.normal(k3, (d1, d2), dtype=jnp.float32) * (1.0 / d2) ** 0.5

    out = glu_forward(x, w1, w2, w3)
    jax.block_until_ready(out)

    ref = glu_reference(x, w1, w2, w3)
    assert out.shape == (batch, seq, d1), out.shape
    assert jnp.allclose(out, ref, atol=1e-4, rtol=1e-4), "mismatch vs reference"

    print("KERNEL_OK")
</pallas_src>

<mosaic_0001>
module attributes {stable_mosaic.version = 11 : i64} {
  func.func @_glu_kernel(%arg0: i32, %arg1: memref<16x128xf32, #tpu.memory_space<vmem>>, %arg2: memref<128x256xf32, #tpu.memory_space<vmem>>, %arg3: memref<128x128xf32, #tpu.memory_space<vmem>>, %arg4: memref<16x128xf32, #tpu.memory_space<vmem>>) attributes {dimension_semantics = [#tpu.dimension_semantics<parallel>], iteration_bounds = array<i64: 1>, scalar_prefetch = 0 : i64, scratch_operands = 0 : i64, tpu.core_type = #tpu.core_type<tc>, window_params = [{transform_indices = @transform_0, window_bounds = array<i64: 16, 128>}, {pipeline_mode = #tpu.pipeline_mode<synchronous>, transform_indices = @transform_1, window_bounds = array<i64: 128, 256>}, {pipeline_mode = #tpu.pipeline_mode<synchronous>, transform_indices = @transform_2, window_bounds = array<i64: 128, 128>}, {transform_indices = @transform_3, window_bounds = array<i64: 16, 128>}]} {
    %c0 = arith.constant 0 : index
    %c0_0 = arith.constant 0 : index
    %0 = vector.load %arg1[%c0, %c0_0] : memref<16x128xf32, #tpu.memory_space<vmem>>, vector<16x128xf32>
    %c0_1 = arith.constant 0 : index
    %c0_2 = arith.constant 0 : index
    %1 = vector.load %arg2[%c0_1, %c0_2] : memref<128x256xf32, #tpu.memory_space<vmem>>, vector<128x256xf32>
    %cst = arith.constant dense<0.000000e+00> : vector<16x256xf32>
    %2 = tpu.matmul %0, %1, %cst {dimension_numbers = #tpu.dot_dimension_numbers<[1], [0], [0], [1], [0, 0, 1, 1], [], []>} : vector<16x128xf32>, vector<128x256xf32>, vector<16x256xf32> -> vector<16x256xf32>
    %3 = vector.extract_strided_slice %2 {offsets = [0, 0], sizes = [16, 128], strides = [1, 1]} : vector<16x256xf32> to vector<16x128xf32>
    %4 = vector.extract_strided_slice %2 {offsets = [0, 128], sizes = [16, 128], strides = [1, 1]} : vector<16x256xf32> to vector<16x128xf32>
    %5 = arith.mulf %3, %4 : vector<16x128xf32>
    %c0_3 = arith.constant 0 : index
    %c0_4 = arith.constant 0 : index
    %6 = vector.load %arg3[%c0_3, %c0_4] : memref<128x128xf32, #tpu.memory_space<vmem>>, vector<128x128xf32>
    %cst_5 = arith.constant dense<0.000000e+00> : vector<16x128xf32>
    %7 = tpu.matmul %5, %6, %cst_5 {dimension_numbers = #tpu.dot_dimension_numbers<[1], [0], [0], [1], [0, 0, 1, 1], [], []>} : vector<16x128xf32>, vector<128x128xf32>, vector<16x128xf32> -> vector<16x128xf32>
    %c0_6 = arith.constant 0 : index
    %c0_7 = arith.constant 0 : index
    %8 = vector.load %arg4[%c0_6, %c0_7] : memref<16x128xf32, #tpu.memory_space<vmem>>, vector<16x128xf32>
    tpu.vector_store %arg4[%c0_6, %c0_7], %7 {strides = array<i32>} : memref<16x128xf32, #tpu.memory_space<vmem>>, vector<16x128xf32>,
    return
  }
  func.func @transform_0(%arg0: i32) -> (i32, i32) {
    %c0_i32 = arith.constant 0 : i32
    %c0_i32_0 = arith.constant 0 : i32
    return %arg0, %c0_i32 : i32, i32
  }
  func.func @transform_1(%arg0: i32) -> (i32, i32) {
    %c0_i32 = arith.constant 0 : i32
    %c0_i32_0 = arith.constant 0 : i32
    %c0_i32_1 = arith.constant 0 : i32
    return %c0_i32, %c0_i32_0 : i32, i32
  }
  func.func @transform_2(%arg0: i32) -> (i32, i32) {
    %c0_i32 = arith.constant 0 : i32
    %c0_i32_0 = arith.constant 0 : i32
    %c0_i32_1 = arith.constant 0 : i32
    return %c0_i32, %c0_i32_0 : i32, i32
  }
  func.func @transform_3(%arg0: i32) -> (i32, i32) {
    %c0_i32 = arith.constant 0 : i32
    %c0_i32_0 = arith.constant 0 : i32
    return %arg0, %c0_i32 : i32, i32
  }
}

module attributes {stable_mosaic.version = 11 : i64} {
  func.func @_glu_kernel(%arg0: i32, %arg1: memref<16x128xf32, #tpu.memory_space<vmem>>, %arg2: memref<128x256xf32, #tpu.memory_space<vmem>>, %arg3: memref<128x128xf32, #tpu.memory_space<vmem>>, %arg4: memref<16x128xf32, #tpu.memory_space<vmem>>) attributes {dimension_semantics = [#tpu.dimension_semantics<parallel>], iteration_bounds = array<i64: 1>, scalar_prefetch = 0 : i64, scratch_operands = 0 : i64, tpu.core_type = #tpu.core_type<tc>, window_params = [{transform_indices = @transform_0, window_bounds = array<i64: 16, 128>}, {pipeline_mode = #tpu.pipeline_mode<synchronous>, transform_indices = @transform_1, window_bounds = array<i64: 128, 256>}, {pipeline_mode = #tpu.pipeline_mode<synchronous>, transform_indices = @transform_2, window_bounds = array<i64: 128, 128>}, {transform_indices = @transform_3, window_bounds = array<i64: 16, 128>}]} {
    %c0 = arith.constant 0 : index
    %c0_0 = arith.constant 0 : index
    %0 = vector.load %arg1[%c0, %c0_0] : memref<16x128xf32, #tpu.memory_space<vmem>>, vector<16x128xf32>
    %c0_1 = arith.constant 0 : index
    %c0_2 = arith.constant 0 : index
    %1 = vector.load %arg2[%c0_1, %c0_2] : memref<128x256xf32, #tpu.memory_space<vmem>>, vector<128x256xf32>
    %cst = arith.constant dense<0.000000e+00> : vector<16x256xf32>
    %2 = tpu.matmul %0, %1, %cst {dimension_numbers = #tpu.dot_dimension_numbers<[1], [0], [0], [1], [0, 0, 1, 1], [], []>} : vector<16x128xf32>, vector<128x256xf32>, vector<16x256xf32> -> vector<16x256xf32>
    %3 = vector.extract_strided_slice %2 {offsets = [0, 0], sizes = [16, 128], strides = [1, 1]} : vector<16x256xf32> to vector<16x128xf32>
    %4 = vector.extract_strided_slice %2 {offsets = [0, 128], sizes = [16, 128], strides = [1, 1]} : vector<16x256xf32> to vector<16x128xf32>
    %5 = arith.mulf %3, %4 : vector<16x128xf32>
    %c0_3 = arith.constant 0 : index
    %c0_4 = arith.constant 0 : index
    %6 = vector.load %arg3[%c0_3, %c0_4] : memref<128x128xf32, #tpu.memory_space<vmem>>, vector<128x128xf32>
    %cst_5 = arith.constant dense<0.000000e+00> : vector<16x128xf32>
    %7 = tpu.matmul %5, %6, %cst_5 {dimension_numbers = #tpu.dot_dimension_numbers<[1], [0], [0], [1], [0, 0, 1, 1], [], []>} : vector<16x128xf32>, vector<128x128xf32>, vector<16x128xf32> -> vector<16x128xf32>
    %c0_6 = arith.constant 0 : index
    %c0_7 = arith.constant 0 : index
    %8 = vector.load %arg4[%c0_6, %c0_7] : memref<16x128xf32, #tpu.memory_space<vmem>>, vector<16x128xf32>
    tpu.vector_store %arg4[%c0_6, %c0_7], %7 {strides = array<i32>} : memref<16x128xf32, #tpu.memory_space<vmem>>, vector<16x128xf32>,
    return
  }
  func.func @transform_0(%arg0: i32) -> (i32, i32) {
    %c0_i32 = arith.constant 0 : i32
    %c0_i32_0 = arith.constant 0 : i32
    return %arg0, %c0_i32 : i32, i32
  }
  func.func @transform_1(%arg0: i32) -> (i32, i32) {
    %c0_i32 = arith.constant 0 : i32
    %c0_i32_0 = arith.constant 0 : i32
    %c0_i32_1 = arith.constant 0 : i32
    return %c0_i32, %c0_i32_0 : i32, i32
  }
  func.func @transform_2(%arg0: i32) -> (i32, i32) {
    %c0_i32 = arith.constant 0 : i32
    %c0_i32_0 = arith.constant 0 : i32
    %c0_i32_1 = arith.constant 0 : i32
    return %c0_i32, %c0_i32_0 : i32, i32
  }
  func.func @transform_3(%arg0: i32) -> (i32, i32) {
    %c0_i32 = arith.constant 0 : i32
    %c0_i32_0 = arith.constant 0 : i32
    return %arg0, %c0_i32 : i32, i32
  }
}

</mosaic_0001>

<llo_original>
// kernel: _glu_forward_impl.1
$region0: #{_glu_forward_impl.1}
  #allocation0 [shape = 'u32[]', space=smem, size = 0x4, offset = 0x4, fixed_abs, tag = 'smem constant byte address 0x4 - core index']
  #allocation1 [shape = 'u32[144,128]{1,0:T(1,128)}', space=vmem, size = 0x12000, scoped, tag = 'internal scratch']
  %s0 = inlined_call_operand.vmem [shape: f32[16,128], index: 0, kind: input, shape index: {}]
  %s1 = inlined_call_operand.vmem [shape: f32[128,256], index: 1, kind: input, shape index: {}]
  %s2 = inlined_call_operand.vmem [shape: f32[128,128], index: 2, kind: input, shape index: {}]
  %s3 = inlined_call_operand.vmem [shape: f32[16,128], index: 3, kind: output, shape index: {}]
  %s4 = sld [smem:[#allocation0]]
  $region22: #{_glu_forward_impl.1} parent=0
    _
  %s6 = ssub.s32 1, %s4
  %s7 = scalar_select 0, %s6, %s4
  // Predicated region
  $region2: #{_glu_forward_impl.1} parent=0 // pred_check
    _
  $region3: #{_glu_forward_impl.1} parent=0 // pred_check_branch
    %9 = sbr.rel (0) target = $region5
  $region4: #{_glu_forward_impl.1} parent=0 // pred_region
    _
  $region5: #{_glu_forward_impl.1} parent=0 // pred_fallthru
    _
  // Predicated region
  $region6: #{_glu_forward_impl.1} parent=0 // pred_check
    _
  $region7: #{_glu_forward_impl.1} parent=0 // pred_check_branch
    %11 = sbr.rel (0) target = $region9
  $region8: #{_glu_forward_impl.1} parent=0 // pred_region
    _
  $region9: #{_glu_forward_impl.1} parent=0 // pred_fallthru
    _
  // Predicated region
  $region10: #{_glu_forward_impl.1} parent=0 // pred_check
    _
  $region11: #{_glu_forward_impl.1} parent=0 // pred_check_branch
    %13 = sbr.rel (0) target = $region13
  $region12: #{_glu_forward_impl.1} parent=0 // pred_region
    _
  $region13: #{_glu_forward_impl.1} parent=0 // pred_fallthru
    _
  %v14 = vld [vmem:[%s0] sm:$0xff]
  %v15 = vld [vmem:[%s0 + $0x8] sm:$0xff]
  %v16 = vld [vmem:[%s1] sm:$0xff]
  %v17 = vld [vmem:[%s1 + $0x8] sm:$0xff]
  %v18 = vld [vmem:[%s1 + $0x10] sm:$0xff]
  %v19 = vld [vmem:[%s1 + $0x18] sm:$0xff]
  %v20 = vld [vmem:[%s1 + $0x20] sm:$0xff]
  %v21 = vld [vmem:[%s1 + $0x28] sm:$0xff]
  %v22 = vld [vmem:[%s1 + $0x30] sm:$0xff]
  %v23 = vld [vmem:[%s1 + $0x38] sm:$0xff]
  %v24 = vld [vmem:[%s1 + $0x40] sm:$0xff]
  %v25 = vld [vmem:[%s1 + $0x48] sm:$0xff]
  %v26 = vld [vmem:[%s1 + $0x50] sm:$0xff]
  %v27 = vld [vmem:[%s1 + $0x58] sm:$0xff]
  %v28 = vld [vmem:[%s1 + $0x60] sm:$0xff]
  %v29 = vld [vmem:[%s1 + $0x68] sm:$0xff]
  %v30 = vld [vmem:[%s1 + $0x70] sm:$0xff]
  %v31 = vld [vmem:[%s1 + $0x78] sm:$0xff]
  %v32 = vld [vmem:[%s1 + $0x80] sm:$0xff]
  %v33 = vld [vmem:[%s1 + $0x88] sm:$0xff]
  %v34 = vld [vmem:[%s1 + $0x90] sm:$0xff]
  %v35 = vld [vmem:[%s1 + $0x98] sm:$0xff]
  %v36 = vld [vmem:[%s1 + $0xa0] sm:$0xff]
  %v37 = vld [vmem:[%s1 + $0xa8] sm:$0xff]
  %v38 = vld [vmem:[%s1 + $0xb0] sm:$0xff]
  %v39 = vld [vmem:[%s1 + $0xb8] sm:$0xff]
  %v40 = vld [vmem:[%s1 + $0xc0] sm:$0xff]
  %v41 = vld [vmem:[%s1 + $0xc8] sm:$0xff]
  %v42 = vld [vmem:[%s1 + $0xd0] sm:$0xff]
  %v43 = vld [vmem:[%s1 + $0xd8] sm:$0xff]
  %v44 = vld [vmem:[%s1 + $0xe0] sm:$0xff]
  %v45 = vld [vmem:[%s1 + $0xe8] sm:$0xff]
  %v46 = vld [vmem:[%s1 + $0xf0] sm:$0xff]
  %v47 = vld [vmem:[%s1 + $0xf8] sm:$0xff]
  %48 = vmatprep.subr.mxu0 %v17
  %49 = vmatpush1.msra.mxu0 %v16
  %50 = vmatprep.subr.mxu0 %v19
  %51 = vmatpush1.msra.mxu0 %v18
  %52 = vmatprep.subr.mxu0 %v21
  %53 = vmatpush1.msra.mxu0 %v20
  %54 = vmatprep.subr.mxu0 %v23
  %55 = vmatpush1.msra.mxu0 %v22
  %56 = vmatprep.subr.mxu0 %v25
  %57 = vmatpush1.msra.mxu0 %v24
  %58 = vmatprep.subr.mxu0 %v27
  %59 = vmatpush1.msra.mxu0 %v26
  %60 = vmatprep.subr.mxu0 %v29
  %61 = vmatpush1.msra.mxu0 %v28
  %62 = vmatprep.subr.mxu0 %v31
  %63 = vmatpush1.msra.mxu0 %v30
  %64 = vmatprep.subr.mxu0 %v33
  %65 = vmatpush1.msra.mxu0 %v32
  %66 = vmatprep.subr.mxu0 %v35
  %67 = vmatpush1.msra.mxu0 %v34
  %68 = vmatprep.subr.mxu0 %v37
  %69 = vmatpush1.msra.mxu0 %v36
  %70 = vmatprep.subr.mxu0 %v39
  %71 = vmatpush1.msra.mxu0 %v38
  %72 = vmatprep.subr.mxu0 %v41
  %73 = vmatpush1.msra.mxu0 %v40
  %74 = vmatprep.subr.mxu0 %v43
  %75 = vmatpush1.msra.mxu0 %v42
  %76 = vmatprep.subr.mxu0 %v45
  %77 = vmatpush1.msra.mxu0 %v44
  %78 = vmatprep.subr.mxu0 %v47
  %79 = vmatpush1.msra.mxu0 %v46
  %80 = vmatprep.subr.mxu0 0.0
  %81 = vmatpush1.msra.mxu0 0.0
  %82 = vmatprep.subr.mxu0 0.0
  %83 = vmatpush1.msra.mxu0 0.0
  %84 = vmatprep.subr.mxu0 0.0
  %85 = vmatpush1.msra.mxu0 0.0
  %86 = vmatprep.subr.mxu0 0.0
  %87 = vmatpush1.msra.mxu0 0.0
  %88 = vmatprep.subr.mxu0 0.0
  %89 = vmatpush1.msra.mxu0 0.0
  %90 = vmatprep.subr.mxu0 0.0
  %91 = vmatpush1.msra.mxu0 0.0
  %92 = vmatprep.subr.mxu0 0.0
  %93 = vmatpush1.msra.mxu0 0.0
  %94 = vmatprep.subr.mxu0 0.0
  %95 = vmatpush1.msra.mxu0 0.0
  %96 = vmatprep.subr.mxu0 0.0
  %97 = vmatpush1.msra.mxu0 0.0
  %98 = vmatprep.subr.mxu0 0.0
  %99 = vmatpush1.msra.mxu0 0.0
  %100 = vmatprep.subr.mxu0 0.0
  %101 = vmatpush1.msra.mxu0 0.0
  %102 = vmatprep.subr.mxu0 0.0
  %103 = vmatpush1.msra.mxu0 0.0
  %104 = vmatprep.subr.mxu0 0.0
  %105 = vmatpush1.msra.mxu0 0.0
  %106 = vmatprep.subr.mxu0 0.0
  %107 = vmatpush1.msra.mxu0 0.0
  %108 = vmatprep.subr.mxu0 0.0
  %109 = vmatpush1.msra.mxu0 0.0
  %110 = vmatprep.subr.mxu0 0.0
  %111 = vmatpush1.msra.mxu0 0.0
  %112 = vmatprep.mubr.f32.mxu0 0.0
  %113 = vmatmul.mubr.f32.gmra.mrb[0].mxu0 %v14
  %v114 = vpop.f32.mrb[0].mxu0
  %v115 = vadd.f32 0.0, %v114
  %v116 = vpop.f32.mrb[0].mxu0
  %v117 = vadd.f32 0.0, %v116
  %118 = vmatprep.mubr.f32.mxu0 0.0
  %119 = vmatmul.mubr.f32.gmra.mrb[0].mxu0 %v15
  %v120 = vpop.f32.mrb[0].mxu0
  %v121 = vadd.f32 0.0, %v120
  %v122 = vpop.f32.mrb[0].mxu0
  %v123 = vadd.f32 0.0, %v122
  %124 = vdwg.mxu0
  %v125 = vmul.f32 %v115, %v117
  %v126 = vmul.f32 %v121, %v123
  %v127 = vld [vmem:[%s2] sm:$0xff]
  %v128 = vld [vmem:[%s2 + $0x8] sm:$0xff]
  %v129 = vld [vmem:[%s2 + $0x10] sm:$0xff]
  %v130 = vld [vmem:[%s2 + $0x18] sm:$0xff]
  %v131 = vld [vmem:[%s2 + $0x20] sm:$0xff]
  %v132 = vld [vmem:[%s2 + $0x28] sm:$0xff]
  %v133 = vld [vmem:[%s2 + $0x30] sm:$0xff]
  %v134 = vld [vmem:[%s2 + $0x38] sm:$0xff]
  %v135 = vld [vmem:[%s2 + $0x40] sm:$0xff]
  %v136 = vld [vmem:[%s2 + $0x48] sm:$0xff]
  %v137 = vld [vmem:[%s2 + $0x50] sm:$0xff]
  %v138 = vld [vmem:[%s2 + $0x58] sm:$0xff]
  %v139 = vld [vmem:[%s2 + $0x60] sm:$0xff]
  %v140 = vld [vmem:[%s2 + $0x68] sm:$0xff]
  %v141 = vld [vmem:[%s2 + $0x70] sm:$0xff]
  %v142 = vld [vmem:[%s2 + $0x78] sm:$0xff]
  %143 = vmatprep.subr.mxu0 0.0
  %144 = vmatpush1.msra.mxu0 %v127
  %145 = vmatprep.subr.mxu0 0.0
  %146 = vmatpush1.msra.mxu0 %v128
  %147 = vmatprep.subr.mxu0 0.0
  %148 = vmatpush1.msra.mxu0 %v129
  %149 = vmatprep.subr.mxu0 0.0
  %150 = vmatpush1.msra.mxu0 %v130
  %151 = vmatprep.subr.mxu0 0.0
  %152 = vmatpush1.msra.mxu0 %v131
  %153 = vmatprep.subr.mxu0 0.0
  %154 = vmatpush1.msra.mxu0 %v132
  %155 = vmatprep.subr.mxu0 0.0
  %156 = vmatpush1.msra.mxu0 %v133
  %157 = vmatprep.subr.mxu0 0.0
  %158 = vmatpush1.msra.mxu0 %v134
  %159 = vmatprep.subr.mxu0 0.0
  %160 = vmatpush1.msra.mxu0 %v135
  %161 = vmatprep.subr.mxu0 0.0
  %162 = vmatpush1.msra.mxu0 %v136
  %163 = vmatprep.subr.mxu0 0.0
  %164 = vmatpush1.msra.mxu0 %v137
  %165 = vmatprep.subr.mxu0 0.0
  %166 = vmatpush1.msra.mxu0 %v138
  %167 = vmatprep.subr.mxu0 0.0
  %168 = vmatpush1.msra.mxu0 %v139
  %169 = vmatprep.subr.mxu0 0.0
  %170 = vmatpush1.msra.mxu0 %v140
  %171 = vmatprep.subr.mxu0 0.0
  %172 = vmatpush1.msra.mxu0 %v141
  %173 = vmatprep.subr.mxu0 0.0
  %174 = vmatpush1.msra.mxu0 %v142
  %175 = vmatprep.subr.mxu0 0.0
  %176 = vmatpush1.msra.mxu0 0.0
  %177 = vmatprep.subr.mxu0 0.0
  %178 = vmatpush1.msra.mxu0 0.0
  %179 = vmatprep.subr.mxu0 0.0
  %180 = vmatpush1.msra.mxu0 0.0
  %181 = vmatprep.subr.mxu0 0.0
  %182 = vmatpush1.msra.mxu0 0.0
  %183 = vmatprep.subr.mxu0 0.0
  %184 = vmatpush1.msra.mxu0 0.0
  %185 = vmatprep.subr.mxu0 0.0
  %186 = vmatpush1.msra.mxu0 0.0
  %187 = vmatprep.subr.mxu0 0.0
  %188 = vmatpush1.msra.mxu0 0.0
  %189 = vmatprep.subr.mxu0 0.0
  %190 = vmatpush1.msra.mxu0 0.0
  %191 = vmatprep.subr.mxu0 0.0
  %192 = vmatpush1.msra.mxu0 0.0
  %193 = vmatprep.subr.mxu0 0.0
  %194 = vmatpush1.msra.mxu0 0.0
  %195 = vmatprep.subr.mxu0 0.0
  %196 = vmatpush1.msra.mxu0 0.0
  %197 = vmatprep.subr.mxu0 0.0
  %198 = vmatpush1.msra.mxu0 0.0
  %199 = vmatprep.subr.mxu0 0.0
  %200 = vmatpush1.msra.mxu0 0.0
  %201 = vmatprep.subr.mxu0 0.0
  %202 = vmatpush1.msra.mxu0 0.0
  %203 = vmatprep.subr.mxu0 0.0
  %204 = vmatpush1.msra.mxu0 0.0
  %205 = vmatprep.subr.mxu0 0.0
  %206 = vmatpush1.msra.mxu0 0.0
  %207 = vmatprep.mubr.f32.mxu0 0.0
  %208 = vmatmul.mubr.f32.gmra.mrb[0].mxu0 %v125
  %v209 = vpop.f32.mrb[0].mxu0
  %v210 = vadd.f32 0.0, %v209
  %v211 = vpop.f32.mrb[0].mxu0
  %212 = vmatprep.mubr.f32.mxu0 0.0
  %213 = vmatmul.mubr.f32.gmra.mrb[0].mxu0 %v126
  %v214 = vpop.f32.mrb[0].mxu0
  %v215 = vadd.f32 0.0, %v214
  %v216 = vpop.f32.mrb[0].mxu0
  %217 = vdwg.mxu0
  %218 = vst [vmem:[%s3] sm:$0xff] %v210
  %219 = vst [vmem:[%s3 + $0x8] sm:$0xff] %v215
  // Predicated region
  $region14: #{_glu_forward_impl.1} parent=0 // pred_check
    _
  $region15: #{_glu_forward_impl.1} parent=0 // pred_check_branch
    %221 = sbr.rel (0) target = $region17
  $region16: #{_glu_forward_impl.1} parent=0 // pred_region
    _
  $region17: #{_glu_forward_impl.1} parent=0 // pred_fallthru
    _
  // Predicated region
  $region18: #{_glu_forward_impl.1} parent=0 // pred_check
    _
  $region19: #{_glu_forward_impl.1} parent=0 // pred_check_branch
    %223 = sbr.rel (0) target = $region21
  $region20: #{_glu_forward_impl.1} parent=0 // pred_region
    _
  $region21: #{_glu_forward_impl.1} parent=0 // pred_fallthru
    _

// kernel: _glu_forward_impl.1
$region0: #{_glu_forward_impl.1}
  #allocation0 [shape = 'u32[]', space=smem, size = 0x4, offset = 0x4, fixed_abs, tag = 'smem constant byte address 0x4 - core index']
  #allocation1 [shape = 'u32[144,128]{1,0:T(1,128)}', space=vmem, size = 0x12000, scoped, tag = 'internal scratch']
  %s0 = inlined_call_operand.vmem [shape: f32[16,128], index: 0, kind: input, shape index: {}]
  %s1 = inlined_call_operand.vmem [shape: f32[128,256], index: 1, kind: input, shape index: {}]
  %s2 = inlined_call_operand.vmem [shape: f32[128,128], index: 2, kind: input, shape index: {}]
  %s3 = inlined_call_operand.vmem [shape: f32[16,128], index: 3, kind: output, shape index: {}]
  %s4 = sld [smem:[#allocation0]]
  $region22: #{_glu_forward_impl.1} parent=0
    _
  %s6 = ssub.s32 1, %s4
  %s7 = scalar_select 0, %s6, %s4
  // Predicated region
  $region2: #{_glu_forward_impl.1} parent=0 // pred_check
    _
  $region3: #{_glu_forward_impl.1} parent=0 // pred_check_branch
    %9 = sbr.rel (0) target = $region5
  $region4: #{_glu_forward_impl.1} parent=0 // pred_region
    _
  $region5: #{_glu_forward_impl.1} parent=0 // pred_fallthru
    _
  // Predicated region
  $region6: #{_glu_forward_impl.1} parent=0 // pred_check
    _
  $region7: #{_glu_forward_impl.1} parent=0 // pred_check_branch
    %11 = sbr.rel (0) target = $region9
  $region8: #{_glu_forward_impl.1} parent=0 // pred_region
    _
  $region9: #{_glu_forward_impl.1} parent=0 // pred_fallthru
    _
  // Predicated region
  $region10: #{_glu_forward_impl.1} parent=0 // pred_check
    _
  $region11: #{_glu_forward_impl.1} parent=0 // pred_check_branch
    %13 = sbr.rel (0) target = $region13
  $region12: #{_glu_forward_impl.1} parent=0 // pred_region
    _
  $region13: #{_glu_forward_impl.1} parent=0 // pred_fallthru
    _
  %v14 = vld [vmem:[%s0] sm:$0xff]
  %v15 = vld [vmem:[%s0 + $0x8] sm:$0xff]
  %v16 = vld [vmem:[%s1] sm:$0xff]
  %v17 = vld [vmem:[%s1 + $0x8] sm:$0xff]
  %v18 = vld [vmem:[%s1 + $0x10] sm:$0xff]
  %v19 = vld [vmem:[%s1 + $0x18] sm:$0xff]
  %v20 = vld [vmem:[%s1 + $0x20] sm:$0xff]
  %v21 = vld [vmem:[%s1 + $0x28] sm:$0xff]
  %v22 = vld [vmem:[%s1 + $0x30] sm:$0xff]
  %v23 = vld [vmem:[%s1 + $0x38] sm:$0xff]
  %v24 = vld [vmem:[%s1 + $0x40] sm:$0xff]
  %v25 = vld [vmem:[%s1 + $0x48] sm:$0xff]
  %v26 = vld [vmem:[%s1 + $0x50] sm:$0xff]
  %v27 = vld [vmem:[%s1 + $0x58] sm:$0xff]
  %v28 = vld [vmem:[%s1 + $0x60] sm:$0xff]
  %v29 = vld [vmem:[%s1 + $0x68] sm:$0xff]
  %v30 = vld [vmem:[%s1 + $0x70] sm:$0xff]
  %v31 = vld [vmem:[%s1 + $0x78] sm:$0xff]
  %v32 = vld [vmem:[%s1 + $0x80] sm:$0xff]
  %v33 = vld [vmem:[%s1 + $0x88] sm:$0xff]
  %v34 = vld [vmem:[%s1 + $0x90] sm:$0xff]
  %v35 = vld [vmem:[%s1 + $0x98] sm:$0xff]
  %v36 = vld [vmem:[%s1 + $0xa0] sm:$0xff]
  %v37 = vld [vmem:[%s1 + $0xa8] sm:$0xff]
  %v38 = vld [vmem:[%s1 + $0xb0] sm:$0xff]
  %v39 = vld [vmem:[%s1 + $0xb8] sm:$0xff]
  %v40 = vld [vmem:[%s1 + $0xc0] sm:$0xff]
  %v41 = vld [vmem:[%s1 + $0xc8] sm:$0xff]
  %v42 = vld [vmem:[%s1 + $0xd0] sm:$0xff]
  %v43 = vld [vmem:[%s1 + $0xd8] sm:$0xff]
  %v44 = vld [vmem:[%s1 + $0xe0] sm:$0xff]
  %v45 = vld [vmem:[%s1 + $0xe8] sm:$0xff]
  %v46 = vld [vmem:[%s1 + $0xf0] sm:$0xff]
  %v47 = vld [vmem:[%s1 + $0xf8] sm:$0xff]
  %48 = vmatprep.subr.mxu0 %v17
  %49 = vmatpush1.msra.mxu0 %v16
  %50 = vmatprep.subr.mxu0 %v19
  %51 = vmatpush1.msra.mxu0 %v18
  %52 = vmatprep.subr.mxu0 %v21
  %53 = vmatpush1.msra.mxu0 %v20
  %54 = vmatprep.subr.mxu0 %v23
  %55 = vmatpush1.msra.mxu0 %v22
  %56 = vmatprep.subr.mxu0 %v25
  %57 = vmatpush1.msra.mxu0 %v24
  %58 = vmatprep.subr.mxu0 %v27
  %59 = vmatpush1.msra.mxu0 %v26
  %60 = vmatprep.subr.mxu0 %v29
  %61 = vmatpush1.msra.mxu0 %v28
  %62 = vmatprep.subr.mxu0 %v31
  %63 = vmatpush1.msra.mxu0 %v30
  %64 = vmatprep.subr.mxu0 %v33
  %65 = vmatpush1.msra.mxu0 %v32
  %66 = vmatprep.subr.mxu0 %v35
  %67 = vmatpush1.msra.mxu0 %v34
  %68 = vmatprep.subr.mxu0 %v37
  %69 = vmatpush1.msra.mxu0 %v36
  %70 = vmatprep.subr.mxu0 %v39
  %71 = vmatpush1.msra.mxu0 %v38
  %72 = vmatprep.subr.mxu0 %v41
  %73 = vmatpush1.msra.mxu0 %v40
  %74 = vmatprep.subr.mxu0 %v43
  %75 = vmatpush1.msra.mxu0 %v42
  %76 = vmatprep.subr.mxu0 %v45
  %77 = vmatpush1.msra.mxu0 %v44
  %78 = vmatprep.subr.mxu0 %v47
  %79 = vmatpush1.msra.mxu0 %v46
  %80 = vmatprep.subr.mxu0 0.0
  %81 = vmatpush1.msra.mxu0 0.0
  %82 = vmatprep.subr.mxu0 0.0
  %83 = vmatpush1.msra.mxu0 0.0
  %84 = vmatprep.subr.mxu0 0.0
  %85 = vmatpush1.msra.mxu0 0.0
  %86 = vmatprep.subr.mxu0 0.0
  %87 = vmatpush1.msra.mxu0 0.0
  %88 = vmatprep.subr.mxu0 0.0
  %89 = vmatpush1.msra.mxu0 0.0
  %90 = vmatprep.subr.mxu0 0.0
  %91 = vmatpush1.msra.mxu0 0.0
  %92 = vmatprep.subr.mxu0 0.0
  %93 = vmatpush1.msra.mxu0 0.0
  %94 = vmatprep.subr.mxu0 0.0
  %95 = vmatpush1.msra.mxu0 0.0
  %96 = vmatprep.subr.mxu0 0.0
  %97 = vmatpush1.msra.mxu0 0.0
  %98 = vmatprep.subr.mxu0 0.0
  %99 = vmatpush1.msra.mxu0 0.0
  %100 = vmatprep.subr.mxu0 0.0
  %101 = vmatpush1.msra.mxu0 0.0
  %102 = vmatprep.subr.mxu0 0.0
  %103 = vmatpush1.msra.mxu0 0.0
  %104 = vmatprep.subr.mxu0 0.0
  %105 = vmatpush1.msra.mxu0 0.0
  %106 = vmatprep.subr.mxu0 0.0
  %107 = vmatpush1.msra.mxu0 0.0
  %108 = vmatprep.subr.mxu0 0.0
  %109 = vmatpush1.msra.mxu0 0.0
  %110 = vmatprep.subr.mxu0 0.0
  %111 = vmatpush1.msra.mxu0 0.0
  %112 = vmatprep.mubr.f32.mxu0 0.0
  %113 = vmatmul.mubr.f32.gmra.mrb[0].mxu0 %v14
  %v114 = vpop.f32.mrb[0].mxu0
  %v115 = vadd.f32 0.0, %v114
  %v116 = vpop.f32.mrb[0].mxu0
  %v117 = vadd.f32 0.0, %v116
  %118 = vmatprep.mubr.f32.mxu0 0.0
  %119 = vmatmul.mubr.f32.gmra.mrb[0].mxu0 %v15
  %v120 = vpop.f32.mrb[0].mxu0
  %v121 = vadd.f32 0.0, %v120
  %v122 = vpop.f32.mrb[0].mxu0
  %v123 = vadd.f32 0.0, %v122
  %124 = vdwg.mxu0
  %v125 = vmul.f32 %v115, %v117
  %v126 = vmul.f32 %v121, %v123
  %v127 = vld [vmem:[%s2] sm:$0xff]
  %v128 = vld [vmem:[%s2 + $0x8] sm:$0xff]
  %v129 = vld [vmem:[%s2 + $0x10] sm:$0xff]
  %v130 = vld [vmem:[%s2 + $0x18] sm:$0xff]
  %v131 = vld [vmem:[%s2 + $0x20] sm:$0xff]
  %v132 = vld [vmem:[%s2 + $0x28] sm:$0xff]
  %v133 = vld [vmem:[%s2 + $0x30] sm:$0xff]
  %v134 = vld [vmem:[%s2 + $0x38] sm:$0xff]
  %v135 = vld [vmem:[%s2 + $0x40] sm:$0xff]
  %v136 = vld [vmem:[%s2 + $0x48] sm:$0xff]
  %v137 = vld [vmem:[%s2 + $0x50] sm:$0xff]
  %v138 = vld [vmem:[%s2 + $0x58] sm:$0xff]
  %v139 = vld [vmem:[%s2 + $0x60] sm:$0xff]
  %v140 = vld [vmem:[%s2 + $0x68] sm:$0xff]
  %v141 = vld [vmem:[%s2 + $0x70] sm:$0xff]
  %v142 = vld [vmem:[%s2 + $0x78] sm:$0xff]
  %143 = vmatprep.subr.mxu0 0.0
  %144 = vmatpush1.msra.mxu0 %v127
  %145 = vmatprep.subr.mxu0 0.0
  %146 = vmatpush1.msra.mxu0 %v128
  %147 = vmatprep.subr.mxu0 0.0
  %148 = vmatpush1.msra.mxu0 %v129
  %149 = vmatprep.subr.mxu0 0.0
  %150 = vmatpush1.msra.mxu0 %v130
  %151 = vmatprep.subr.mxu0 0.0
  %152 = vmatpush1.msra.mxu0 %v131
  %153 = vmatprep.subr.mxu0 0.0
  %154 = vmatpush1.msra.mxu0 %v132
  %155 = vmatprep.subr.mxu0 0.0
  %156 = vmatpush1.msra.mxu0 %v133
  %157 = vmatprep.subr.mxu0 0.0
  %158 = vmatpush1.msra.mxu0 %v134
  %159 = vmatprep.subr.mxu0 0.0
  %160 = vmatpush1.msra.mxu0 %v135
  %161 = vmatprep.subr.mxu0 0.0
  %162 = vmatpush1.msra.mxu0 %v136
  %163 = vmatprep.subr.mxu0 0.0
  %164 = vmatpush1.msra.mxu0 %v137
  %165 = vmatprep.subr.mxu0 0.0
  %166 = vmatpush1.msra.mxu0 %v138
  %167 = vmatprep.subr.mxu0 0.0
  %168 = vmatpush1.msra.mxu0 %v139
  %169 = vmatprep.subr.mxu0 0.0
  %170 = vmatpush1.msra.mxu0 %v140
  %171 = vmatprep.subr.mxu0 0.0
  %172 = vmatpush1.msra.mxu0 %v141
  %173 = vmatprep.subr.mxu0 0.0
  %174 = vmatpush1.msra.mxu0 %v142
  %175 = vmatprep.subr.mxu0 0.0
  %176 = vmatpush1.msra.mxu0 0.0
  %177 = vmatprep.subr.mxu0 0.0
  %178 = vmatpush1.msra.mxu0 0.0
  %179 = vmatprep.subr.mxu0 0.0
  %180 = vmatpush1.msra.mxu0 0.0
  %181 = vmatprep.subr.mxu0 0.0
  %182 = vmatpush1.msra.mxu0 0.0
  %183 = vmatprep.subr.mxu0 0.0
  %184 = vmatpush1.msra.mxu0 0.0
  %185 = vmatprep.subr.mxu0 0.0
  %186 = vmatpush1.msra.mxu0 0.0
  %187 = vmatprep.subr.mxu0 0.0
  %188 = vmatpush1.msra.mxu0 0.0
  %189 = vmatprep.subr.mxu0 0.0
  %190 = vmatpush1.msra.mxu0 0.0
  %191 = vmatprep.subr.mxu0 0.0
  %192 = vmatpush1.msra.mxu0 0.0
  %193 = vmatprep.subr.mxu0 0.0
  %194 = vmatpush1.msra.mxu0 0.0
  %195 = vmatprep.subr.mxu0 0.0
  %196 = vmatpush1.msra.mxu0 0.0
  %197 = vmatprep.subr.mxu0 0.0
  %198 = vmatpush1.msra.mxu0 0.0
  %199 = vmatprep.subr.mxu0 0.0
  %200 = vmatpush1.msra.mxu0 0.0
  %201 = vmatprep.subr.mxu0 0.0
  %202 = vmatpush1.msra.mxu0 0.0
  %203 = vmatprep.subr.mxu0 0.0
  %204 = vmatpush1.msra.mxu0 0.0
  %205 = vmatprep.subr.mxu0 0.0
  %206 = vmatpush1.msra.mxu0 0.0
  %207 = vmatprep.mubr.f32.mxu0 0.0
  %208 = vmatmul.mubr.f32.gmra.mrb[0].mxu0 %v125
  %v209 = vpop.f32.mrb[0].mxu0
  %v210 = vadd.f32 0.0, %v209
  %v211 = vpop.f32.mrb[0].mxu0
  %212 = vmatprep.mubr.f32.mxu0 0.0
  %213 = vmatmul.mubr.f32.gmra.mrb[0].mxu0 %v126
  %v214 = vpop.f32.mrb[0].mxu0
  %v215 = vadd.f32 0.0, %v214
  %v216 = vpop.f32.mrb[0].mxu0
  %217 = vdwg.mxu0
  %218 = vst [vmem:[%s3] sm:$0xff] %v210
  %219 = vst [vmem:[%s3 + $0x8] sm:$0xff] %v215
  // Predicated region
  $region14: #{_glu_forward_impl.1} parent=0 // pred_check
    _
  $region15: #{_glu_forward_impl.1} parent=0 // pred_check_branch
    %221 = sbr.rel (0) target = $region17
  $region16: #{_glu_forward_impl.1} parent=0 // pred_region
    _
  $region17: #{_glu_forward_impl.1} parent=0 // pred_fallthru
    _
  // Predicated region
  $region18: #{_glu_forward_impl.1} parent=0 // pred_check
    _
  $region19: #{_glu_forward_impl.1} parent=0 // pred_check_branch
    %223 = sbr.rel (0) target = $region21
  $region20: #{_glu_forward_impl.1} parent=0 // pred_region
    _
  $region21: #{_glu_forward_impl.1} parent=0 // pred_fallthru
    _

</llo_original>
